<compile_context>
chip_gen: v5e
topology: v5e:2x2
jax: 0.10.0
libtpu: 0.0.40
codegen_flags: <defaults>
</compile_context>

<pallas_src>
import functools

import jax
import jax.numpy as jnp
from jax.experimental import pallas as pl
from jax.experimental.pallas import tpu as pltpu


_TARGET_BLOCK_BYTES = 8 * 1024 * 1024          # per x / out block
_RESIDENT_MASK_MAX_BYTES = 1 * 1024 * 1024     # VMEM budget for a resident mask
_SUBLANE_FOR_ITEMSIZE = {4: 8, 2: 16, 1: 32}   # packed sublane count per dtype


def _droppath_kernel_resident(x_ref, mask_ref, o_ref, *, row_tile):
    # mask_ref: (rows_padded, 1) f32, fully VMEM-resident (its block index is
    # constant across the grid, so Pallas only copies it once).
    r0 = pl.multiple_of(pl.program_id(0) * row_tile, row_tile)
    m = mask_ref[pl.ds(r0, row_tile), :]
    o_ref[...] = (x_ref[...] * m).astype(o_ref.dtype)


def _droppath_kernel_blocked(x_ref, mask_ref, o_ref):
    # mask_ref: (row_tile, 1) f32 sliver streamed alongside the x tile.
    o_ref[...] = (x_ref[...] * mask_ref[...]).astype(o_ref.dtype)


def _vmem_limit_bytes():
    """Generation-aware scoped-VMEM limit (v7x: 64 MiB/core, v5e/v6e: 128 MiB)."""
    cap = 64 * 1024 * 1024
    try:
        cap = int(getattr(pltpu.get_tpu_info(), "vmem_capacity_bytes", cap))
    except Exception:
        pass
    return 64 * 1024 * 1024 if cap >= 96 * 1024 * 1024 else 44 * 1024 * 1024


def _choose_layout(batch, n_feat, itemsize):
    """Pick (cols, rows, row_tile, sub) for a lane/sublane-dense (rows, cols) view.

    cols: largest 128-multiple divisor of n_feat (<= 2048), preferring one that
          fills at least one packed sublane tile; n_feat itself if none exists.
    rows: batch * (n_feat // cols).
    row_tile: multiple of the packed-sublane count, sized to ~_TARGET_BLOCK_BYTES,
              clamped so the grid has >= 2 steps whenever rows allows it.
    """
    sub = _SUBLANE_FOR_ITEMSIZE.get(itemsize, 8)

    cols = None
    for c in range(2048, 0, -128):
        if n_feat % c == 0:
            if cols is None:
                cols = c                       # largest 128-multiple divisor (backup)
            if batch * (n_feat // c) >= sub:
                cols = c                       # prefer filling the sublane dim
                break
    if cols is None:
        cols = n_feat                          # full-extent last-dim block (legal)
    rows = batch * (n_feat // cols)

    row_tile = max(sub, (_TARGET_BLOCK_BYTES // (cols * itemsize)) // sub * sub)
    if row_tile >= rows:
        if rows >= 2 * sub:
            # Keep >= 2 grid steps so the 'parallel' axis shards across both
            # v7x TensorCores instead of leaving one idle.
            row_tile = (rows // 2) // sub * sub
        else:
            row_tile = rows                    # full-extent row block (legal)
    return cols, rows, row_tile, sub


def drop_path(x, drop_prob, key, training=True):
    """DropPath forward. Mask is drawn per batch element (like torch.uniform_)."""
    drop_prob = float(drop_prob)
    if drop_prob <= 0.0 or not training:
        return x
    if not jnp.issubdtype(x.dtype, jnp.floating):
        raise TypeError("drop_path Pallas kernel requires a floating-point input")
    keep_prob = 1.0 - drop_prob

    B = x.shape[0]
    orig_shape = x.shape
    orig_dtype = x.dtype

    # Per-sample uniform draw (tiny wrapper glue). 1/keep_prob is folded into
    # the mask; kept in f32 so the scale is not rounded for bf16 inputs.
    u = jax.random.uniform(key, (B, 1), dtype=jnp.float32)
    scaled_mask = (u < keep_prob).astype(jnp.float32) * (1.0 / keep_prob)   # (B, 1)

    xf = x.reshape(B, -1)
    N = xf.shape[1]
    cols, rows, row_tile, _sub = _choose_layout(B, N, xf.dtype.itemsize)
    groups = N // cols
    xr = xf.reshape(rows, cols)

    # Per-row mask via broadcast+reshape (pure layout op, no gather).
    mask_rows = jnp.broadcast_to(scaled_mask, (B, groups)).reshape(rows, 1)

    n_tiles = -(-rows // row_tile)
    grid = (n_tiles,)

    rows_padded = n_tiles * row_tile
    resident_bytes = ((rows_padded + 7) // 8) * 8 * 128 * 4   # lane-padded f32
    use_resident = resident_bytes <= _RESIDENT_MASK_MAX_BYTES

    if use_resident:
        if rows_padded != rows:
            # Padding the (rows, 1) mask is trivially cheap and keeps the
            # in-kernel dynamic slice in bounds on the ragged last tile.
            mask_rows = jnp.pad(mask_rows, ((0, rows_padded - rows), (0, 0)))
        mask_spec = pl.BlockSpec((rows_padded, 1), lambda i: (0, 0))
        kernel = functools.partial(_droppath_kernel_resident, row_tile=row_tile)
    else:
        mask_spec = pl.BlockSpec((row_tile, 1), lambda i: (i, 0))
        kernel = _droppath_kernel_blocked

    out = pl.pallas_call(
        kernel,
        out_shape=jax.ShapeDtypeStruct((rows, cols), orig_dtype),
        grid_spec=pltpu.PrefetchScalarGridSpec(
            num_scalar_prefetch=0,
            grid=grid,
            in_specs=[
                pl.BlockSpec((row_tile, cols), lambda i: (i, 0)),   # x tile
                mask_spec,                                          # keep mask
            ],
            out_specs=pl.BlockSpec((row_tile, cols), lambda i: (i, 0)),
        ),
        compiler_params=pltpu.CompilerParams(
            dimension_semantics=("parallel",),
            vmem_limit_bytes=_vmem_limit_bytes(),
        ),
    )(xr, mask_rows)

    return out.reshape(orig_shape)


if __name__ == "__main__":
    key = jax.random.PRNGKey(0)
    k_x, k_mask = jax.random.split(key)

    drop_prob = 0.5
    keep_prob = 1.0 - drop_prob

    # Small NCHW input consistent with how DropPath is used inside MHCCT.
    x = jax.random.normal(k_x, (2, 4, 16, 16), dtype=jnp.float32)
    y = jax.block_until_ready(drop_path(x, drop_prob, k_mask, training=True))

    # Pure-JAX reference for correctness (same per-sample uniform draw).
    u = jax.random.uniform(k_mask, (2, 1), dtype=jnp.float32)
    keep_mask = (u < keep_prob).astype(jnp.float32).reshape(2, 1, 1, 1)
    y_ref = x / keep_prob * keep_mask
    assert jnp.allclose(y, y_ref, atol=1e-6), "DropPath kernel mismatch vs reference"

    # Ragged feature size (N % 128 != 0): exercises the pad-free full-extent path.
    x2 = jax.random.normal(k_x, (2, 3, 5, 7), dtype=jnp.float32)
    y2 = jax.block_until_ready(drop_path(x2, drop_prob, k_mask, training=True))
    y2_ref = x2 / keep_prob * keep_mask
    assert jnp.allclose(y2, y2_ref, atol=1e-6), "DropPath ragged-shape mismatch"

    # Eval / zero-prob paths are identity (plain JAX branch, matches PyTorch).
    y_eval = jax.block_until_ready(drop_path(x, drop_prob, k_mask, training=False))
    assert jnp.array_equal(y_eval, x)
    y_zero = jax.block_until_ready(drop_path(x, 0.0, k_mask, training=True))
    assert jnp.array_equal(y_zero, x)

    print("KERNEL_OK")
</pallas_src>

<mosaic_0001>
module attributes {stable_mosaic.version = 11 : i64} {
  func.func @_droppath_kernel_resident(%arg0: i32, %arg1: memref<8x256xf32, #tpu.memory_space<vmem>>, %arg2: memref<8x1xf32, #tpu.memory_space<vmem>>, %arg3: memref<8x256xf32, #tpu.memory_space<vmem>>) attributes {dimension_semantics = [#tpu.dimension_semantics<parallel>], iteration_bounds = array<i64: 1>, scalar_prefetch = 0 : i64, scratch_operands = 0 : i64, tpu.core_type = #tpu.core_type<tc>, window_params = [{transform_indices = @transform_0, window_bounds = array<i64: 8, 256>}, {pipeline_mode = #tpu.pipeline_mode<synchronous>, transform_indices = @transform_1, window_bounds = array<i64: 8, 1>}, {transform_indices = @transform_2, window_bounds = array<i64: 8, 256>}]} {
    %c8_i32 = arith.constant 8 : i32
    %0 = arith.muli %arg0, %c8_i32 : i32
    %1 = tpu.assume_multiple %0, 8 : i32
    %2 = arith.index_cast %1 : i32 to index
    %c0 = arith.constant 0 : index
    %3 = vector.load %arg2[%2, %c0] : memref<8x1xf32, #tpu.memory_space<vmem>>, vector<8x1xf32>
    %c0_0 = arith.constant 0 : index
    %c0_1 = arith.constant 0 : index
    %4 = vector.load %arg1[%c0_0, %c0_1] : memref<8x256xf32, #tpu.memory_space<vmem>>, vector<8x256xf32>
    %5 = vector.broadcast %3 : vector<8x1xf32> to vector<8x256xf32>
    %6 = arith.mulf %4, %5 : vector<8x256xf32>
    %c0_2 = arith.constant 0 : index
    %c0_3 = arith.constant 0 : index
    %7 = vector.load %arg3[%c0_2, %c0_3] : memref<8x256xf32, #tpu.memory_space<vmem>>, vector<8x256xf32>
    tpu.vector_store %arg3[%c0_2, %c0_3], %6 {strides = array<i32>} : memref<8x256xf32, #tpu.memory_space<vmem>>, vector<8x256xf32>,
    return
  }
  func.func @transform_0(%arg0: i32) -> (i32, i32) {
    %c0_i32 = arith.constant 0 : i32
    %c0_i32_0 = arith.constant 0 : i32
    return %arg0, %c0_i32 : i32, i32
  }
  func.func @transform_1(%arg0: i32) -> (i32, i32) {
    %c0_i32 = arith.constant 0 : i32
    %c0_i32_0 = arith.constant 0 : i32
    %c0_i32_1 = arith.constant 0 : i32
    return %c0_i32, %c0_i32_0 : i32, i32
  }
  func.func @transform_2(%arg0: i32) -> (i32, i32) {
    %c0_i32 = arith.constant 0 : i32
    %c0_i32_0 = arith.constant 0 : i32
    return %arg0, %c0_i32 : i32, i32
  }
}

</mosaic_0001>

<llo_original>
// kernel: tpu_custom_call.1
$region0: #{tpu_custom_call.1}
  #allocation0 [shape = 'u32[]', space=smem, size = 0x4, offset = 0x4, fixed_abs, tag = 'smem constant byte address 0x4 - core index']
  #allocation1 [shape = 'u32[72,128]{1,0:T(1,128)}', space=vmem, size = 0x9000, scoped, tag = 'internal scratch']
  %s0 = inlined_call_operand.hbm [shape: f32[8,256], index: 0, kind: input, shape index: {}]
  %s1 = inlined_call_operand.vmem [shape: f32[8,1], index: 1, kind: input, shape index: {}]
  %s2 = inlined_call_operand.hbm [shape: f32[8,256], index: 2, kind: output, shape index: {}]
  %s3 = sld [smem:[#allocation0]]
  $region22: #{tpu_custom_call.1} parent=0
    _
  %s5 = ssub.s32 1, %s3
  %s6 = scalar_select 0, %s5, %s3
  $region1: #{tpu_custom_call.1} parent=0
    #allocation2 [shape = 'u8[8192]{0}', space=vmem, size = 0x2000, scoped, tag = 'input window, operand 0, single buffered']
    #allocation3 [shape = 's32[1]{0}', space=sflag, size = 0x4, scoped, tag = 'scoped memory for tpu_custom_call.1']
    #allocation4 [shape = 's32[1]{0}', space=sflag, size = 0x4, scoped, tag = 'scoped memory for tpu_custom_call.1']
    #allocation5 [shape = 'u8[8192]{0}', space=vmem, size = 0x2000, scoped, tag = 'output window, operand 0, single buffered']
    %7 = vsyncpa [#allocation3], 0
    %8 = vsyncpa [#allocation4], 0
    // Predicated region
    $region2: #{tpu_custom_call.1} parent=1 // pred_check
      _
    $region3: #{tpu_custom_call.1} parent=1 // pred_check_branch
      %10 = sbr.rel (0) target = $region5
    $region4: #{tpu_custom_call.1} parent=1 // pred_region
      %12 = vsyncadd [#allocation3], 0
      %s14 = sshll.u32 %s0, 4
      %s15 = int_to_ptr.hbm [resolvable:$true] %s14
      %s16 = sshll.u32 [#allocation2], 4
      %s17 = int_to_ptr.vmem [resolvable:$true] %s16
      %19 = dma.hbm_to_vmem [thread:$0]  %s15, 256, %s17, [#allocation3]
    $region5: #{tpu_custom_call.1} parent=1 // pred_fallthru
      _
    // Predicated region
    $region6: #{tpu_custom_call.1} parent=1 // pred_check
      _
    $region7: #{tpu_custom_call.1} parent=1 // pred_check_branch
      %21 = sbr.rel (0) target = $region9
    $region8: #{tpu_custom_call.1} parent=1 // pred_region
      _
    $region9: #{tpu_custom_call.1} parent=1 // pred_fallthru
      _
    // Predicated region
    $region10: #{tpu_custom_call.1} parent=1 // pred_check
      _
    $region11: #{tpu_custom_call.1} parent=1 // pred_check_branch
      %23 = sbr.rel (0) target = $region13
    $region12: #{tpu_custom_call.1} parent=1 // pred_region
      %25 = dma.done [#allocation3], 256
    $region13: #{tpu_custom_call.1} parent=1 // pred_fallthru
      _
    %s26 = smul.u32 0, 8
    %s27 = scalar_lea.vmem %s1, %s26
    %v28 = vld [vmem:[%s27] sm:$0xff]
    %v29 = vld [vmem:[#allocation2] sm:$0xff]
    %v30 = vld [vmem:[#allocation2 + $0x8] sm:$0xff]
    %32 = vset.pattern.permute.xlu0 0
    %33 = vperm.xlu0 %32, %v28
    %v34 = vpop.permute.xlu0 %33
    %v36 = vmul.f32 %v29, %v34
    %v37 = vmul.f32 %v30, %v34
    %38 = vst [vmem:[#allocation5] sm:$0xff] %v36
    %39 = vst [vmem:[#allocation5 + $0x8] sm:$0xff] %v37
    // Predicated region
    $region14: #{tpu_custom_call.1} parent=1 // pred_check
      _
    $region15: #{tpu_custom_call.1} parent=1 // pred_check_branch
      %41 = sbr.rel (0) target = $region17
    $region16: #{tpu_custom_call.1} parent=1 // pred_region
      %43 = vsyncadd [#allocation4], 0
      %s45 = sshll.u32 [#allocation5], 4
      %s46 = int_to_ptr.vmem [resolvable:$true] %s45
      %s47 = sshll.u32 %s2, 4
      %s48 = int_to_ptr.hbm [resolvable:$true] %s47
      %50 = dma.vmem_to_hbm [thread:$0]  %s46, 256, %s48, [#allocation4]
    $region17: #{tpu_custom_call.1} parent=1 // pred_fallthru
      _
    // Predicated region
    $region18: #{tpu_custom_call.1} parent=1 // pred_check
      _
    $region19: #{tpu_custom_call.1} parent=1 // pred_check_branch
      %52 = sbr.rel (0) target = $region21
    $region20: #{tpu_custom_call.1} parent=1 // pred_region
      %54 = dma.done [#allocation4], 256
    $region21: #{tpu_custom_call.1} parent=1 // pred_fallthru
      _
    %55 = vsyncpa [#allocation3], 1
    %56 = vsyncpa [#allocation4], 1

</llo_original>
